<compile_context>
chip_gen: v6e
topology: v6e:2x2x1
jax: 0.10.0
libtpu: 0.0.40
codegen_flags: <defaults>
</compile_context>

<pallas_src>
import functools
import math

import jax
import jax.numpy as jnp
from jax import lax
from jax.experimental import pallas as pl
from jax.experimental.pallas import tpu as pltpu

SELU_ALPHA = 1.6732632423543772
SELU_SCALE = 1.0507009873554805


def _selu(x):
    # f32 SELU; the exp() goes to the EUP slot (free next to MXU/VPU work).
    return SELU_SCALE * jnp.where(x > 0, x, SELU_ALPHA * (jnp.exp(x) - 1.0))


def _round_up(x, m):
    return (x + m - 1) // m * m


def _tpu_defaults():
    """Return (panel width tn, usable VMEM bytes, use panel-parallel split)."""
    try:
        kind = jax.devices()[0].device_kind.lower()
    except Exception:  # no accelerator visible at trace time
        kind = ""
    # MXU native N: 128 on <=v5 generations, 256 on v6e / v7x.
    narrow_mxu = any(t in kind for t in ("v2", "v3", "v4", "v5"))
    tn = 128 if narrow_mxu else 256
    if "7" in kind:            # v7x: 64 MiB VMEM per TC, 2 TensorCores / chip
        usable_vmem = 56 << 20
        two_cores = True
    elif kind:                 # v5e / v6e: 128 MiB VMEM, 1 TensorCore
        usable_vmem = 100 << 20
        two_cores = False
    else:                      # unknown backend: be conservative
        usable_vmem = 48 << 20
        two_cores = False
    return tn, usable_vmem, two_cores


# --------------------------------------------------------------------------
# Kernels
# --------------------------------------------------------------------------
def _fused_kernel(x_ref, w1_ref, b1_ref, w2_ref, b2_ref, o_ref, h_ref, *, chunk):
    """grid = (batch tiles, output column panels); h cached in VMEM scratch."""

    # First layer once per batch tile (j == 0), in lane-aligned chunks so the
    # f32 temporaries stay at block_b x chunk instead of block_b x Np.
    @pl.when(pl.program_id(1) == 0)
    def _():
        # SELU(state) in f32 (AlphaDropout in eval mode == identity); bf16 only
        # as the MXU operand.
        x = _selu(x_ref[...]).astype(jnp.bfloat16)
        n_chunks = h_ref.shape[1] // chunk

        def body(c, carry):
            off = pl.multiple_of(c * chunk, chunk)
            h1 = jnp.dot(x, w1_ref[:, pl.ds(off, chunk)],
                         preferred_element_type=jnp.float32)     # bf16 MXU, f32 acc
            h1 = h1 + b1_ref[:, pl.ds(off, chunk)]
            h_ref[:, pl.ds(off, chunk)] = _selu(h1).astype(jnp.bfloat16)
            return carry

        lax.fori_loop(0, n_chunks, body, 0)

    # Second layer: stream W2 / b2 / output in lane-dense column panels.
    out = jnp.dot(h_ref[...], w2_ref[...], preferred_element_type=jnp.float32)
    o_ref[...] = (out + b2_ref[...]).astype(o_ref.dtype)


def _layer1_kernel(x_ref, w1_ref, b1_ref, h_ref):
    """h = SELU(SELU(x) @ W1 + b1); one hidden-column panel per grid step."""
    x = _selu(x_ref[...]).astype(jnp.bfloat16)
    h1 = jnp.dot(x, w1_ref[...], preferred_element_type=jnp.float32) + b1_ref[...]
    h_ref[...] = _selu(h1).astype(jnp.bfloat16)


def _layer2_kernel(h_ref, w2_ref, b2_ref, o_ref):
    """out = h @ W2 + b2; one output-column panel per grid step."""
    out = jnp.dot(h_ref[...], w2_ref[...], preferred_element_type=jnp.float32)
    o_ref[...] = (out + b2_ref[...]).astype(o_ref.dtype)


# --------------------------------------------------------------------------
# Wrapper
# --------------------------------------------------------------------------
def vqa_decoder(state, w1, b1, w2, b2, *, block_b=None, block_n=None,
                panel_parallel=None):
    """state: [B, state_dim]; w1: [state_dim, vocab_dim]; b1: [vocab_dim];
    w2: [vocab_dim, vocab_dim]; b2: [vocab_dim]."""
    B, state_dim = state.shape
    vocab_dim = w1.shape[1]
    out_dtype = state.dtype
    out_bytes = jnp.dtype(out_dtype).itemsize
    b1 = b1.reshape(1, -1)
    b2 = b2.reshape(1, -1)

    tn_default, usable_vmem, two_cores = _tpu_defaults()
    tn = max(128, _round_up(block_n, 128)) if block_n is not None else tn_default
    use_split = two_cores if panel_parallel is None else panel_parallel

    # ---- lane/MXU friendly padded shapes (zero padding is SELU/matmul neutral)
    Kp = _round_up(state_dim, 128)            # contraction dim of first matmul
    Np = _round_up(vocab_dim, tn)             # hidden / output width (lane-dense)
    chunk = math.gcd(Np, 512)                 # first-layer column chunk (x128)

    # ---- batch tile: >= 16 rows (bf16 packs 16 sublanes/vreg), prefer 128/256,
    # and never split a small batch just to create extra grid steps.
    if block_b is None:
        if B >= 256:
            block_b = 256
        elif B >= 128:
            block_b = 128
        else:
            block_b = _round_up(max(B, 16), 16)
    else:
        block_b = _round_up(max(block_b, 16), 16)

    # ---- explicit per-buffer VMEM budget; shrink block_b (never tn) to fit.
    def fused_bytes(bb):
        return (2 * bb * Kp * 4                    # x tile (f32), double buffered
                + 2 * (Kp * Np * 2 + Np * 4)       # W1 + b1 (2 bufs, never re-DMA'd)
                + 2 * (Np * tn * 2 + tn * 4)       # W2 / b2 panels, double buffered
                + 2 * bb * tn * out_bytes          # output tile, double buffered
                + bb * Np * 2                      # h scratch (bf16)
                + 3 * bb * chunk * 4)              # first-layer chunk temporaries

    def split_bytes(bb):
        l1 = (2 * bb * Kp * 4 + 2 * (Kp * chunk * 2 + chunk * 4)
              + 2 * bb * chunk * 2 + 3 * bb * chunk * 4)
        l2 = (2 * bb * Np * 2 + 2 * (Np * tn * 2 + tn * 4)
              + 2 * bb * tn * out_bytes + 2 * bb * tn * 4)
        return max(l1, l2)

    budget_fn = split_bytes if use_split else fused_bytes
    while budget_fn(block_b) > usable_vmem and block_b > 16:
        block_b = max(16, _round_up(block_b // 2, 16))
    Bp = _round_up(B, block_b)
    n_bt = Bp // block_b
    vmem_limit = int(min(usable_vmem, max(32 << 20, int(budget_fn(block_b) * 1.25))))

    def pad2(a, r, c):
        return jnp.pad(a, ((0, r - a.shape[0]), (0, c - a.shape[1])))

    x_p = pad2(state, Bp, Kp).astype(jnp.float32)   # keep f32: SELU input precision
    w1_p = pad2(w1, Kp, Np).astype(jnp.bfloat16)
    b1_p = pad2(b1, 1, Np).astype(jnp.float32)
    w2_p = pad2(w2, Np, Np).astype(jnp.bfloat16)
    b2_p = pad2(b2, 1, Np).astype(jnp.float32)

    if not use_split:
        # ---- single fused kernel (v5e/v6e: one TensorCore) --------------------
        cost = pl.CostEstimate(
            flops=2 * Bp * Kp * Np + 2 * Bp * Np * Np,
            transcendentals=Bp * (Kp + Np),
            bytes_accessed=(x_p.size * 4 + w1_p.size * 2 + b1_p.size * 4
                            + n_bt * (w2_p.size * 2 + b2_p.size * 4)
                            + Bp * Np * out_bytes))
        out_p = pl.pallas_call(
            functools.partial(_fused_kernel, chunk=chunk),
            out_shape=jax.ShapeDtypeStruct((Bp, Np), out_dtype),
            grid_spec=pltpu.PrefetchScalarGridSpec(
                num_scalar_prefetch=0,
                grid=(n_bt, Np // tn),
                in_specs=[
                    pl.BlockSpec((block_b, Kp), lambda i, j: (i, 0)),  # x tile
                    pl.BlockSpec((Kp, Np), lambda i, j: (0, 0)),       # W1 (resident)
                    pl.BlockSpec((1, Np), lambda i, j: (0, 0)),        # b1 (resident)
                    pl.BlockSpec((Np, tn), lambda i, j: (0, j)),       # W2 column panel
                    pl.BlockSpec((1, tn), lambda i, j: (0, j)),        # b2 panel
                ],
                out_specs=pl.BlockSpec((block_b, tn), lambda i, j: (i, j)),
                scratch_shapes=[pltpu.VMEM((block_b, Np), jnp.bfloat16)]),
            compiler_params=pltpu.CompilerParams(
                dimension_semantics=("parallel", "arbitrary"),
                vmem_limit_bytes=vmem_limit),
            cost_estimate=cost,
        )(x_p, w1_p, b1_p, w2_p, b2_p)
        return out_p[:B, :vocab_dim]

    # ---- v7x (2 TensorCores): two panel-parallel pallas_calls so the dominant
    # W2 stream is sharded across cores (read once per batch tile in total).
    cost1 = pl.CostEstimate(
        flops=2 * Bp * Kp * Np,
        transcendentals=Bp * (Kp + Np),
        bytes_accessed=(x_p.size * 4 + n_bt * (w1_p.size * 2 + b1_p.size * 4)
                        + Bp * Np * 2))
    h_p = pl.pallas_call(
        _layer1_kernel,
        out_shape=jax.ShapeDtypeStruct((Bp, Np), jnp.bfloat16),
        grid_spec=pltpu.PrefetchScalarGridSpec(
            num_scalar_prefetch=0,
            grid=(n_bt, Np // chunk),
            in_specs=[
                pl.BlockSpec((block_b, Kp), lambda i, j: (i, 0)),
                pl.BlockSpec((Kp, chunk), lambda i, j: (0, j)),
                pl.BlockSpec((1, chunk), lambda i, j: (0, j)),
            ],
            out_specs=pl.BlockSpec((block_b, chunk), lambda i, j: (i, j))),
        compiler_params=pltpu.CompilerParams(
            dimension_semantics=("parallel", "parallel"),
            vmem_limit_bytes=vmem_limit),
        cost_estimate=cost1,
    )(x_p, w1_p, b1_p)

    cost2 = pl.CostEstimate(
        flops=2 * Bp * Np * Np,
        transcendentals=0,
        bytes_accessed=(Bp * Np * 2 + n_bt * (w2_p.size * 2 + b2_p.size * 4)
                        + Bp * Np * out_bytes))
    out_p = pl.pallas_call(
        _layer2_kernel,
        out_shape=jax.ShapeDtypeStruct((Bp, Np), out_dtype),
        grid_spec=pltpu.PrefetchScalarGridSpec(
            num_scalar_prefetch=0,
            grid=(n_bt, Np // tn),
            in_specs=[
                pl.BlockSpec((block_b, Np), lambda i, j: (i, 0)),   # h (full K)
                pl.BlockSpec((Np, tn), lambda i, j: (0, j)),        # W2 column panel
                pl.BlockSpec((1, tn), lambda i, j: (0, j)),         # b2 panel
            ],
            out_specs=pl.BlockSpec((block_b, tn), lambda i, j: (i, j))),
        compiler_params=pltpu.CompilerParams(
            dimension_semantics=("parallel", "parallel"),
            vmem_limit_bytes=vmem_limit),
        cost_estimate=cost2,
    )(h_p, w2_p, b2_p)
    return out_p[:B, :vocab_dim]


# --------------------------------------------------------------------------
# References
# --------------------------------------------------------------------------
def reference_bf16(state, w1, b1, w2, b2):
    """Same compute path as the kernels (f32 SELU, bf16 MXU operands, f32 accum)."""
    h = _selu(state.astype(jnp.float32))
    h = jnp.dot(h.astype(jnp.bfloat16), w1.astype(jnp.bfloat16),
                preferred_element_type=jnp.float32) + b1.reshape(1, -1)
    h = _selu(h)
    h = jnp.dot(h.astype(jnp.bfloat16), w2.astype(jnp.bfloat16),
                preferred_element_type=jnp.float32) + b2.reshape(1, -1)
    return h.astype(state.dtype)


def reference_f32(state, w1, b1, w2, b2):
    """Pure f32 module semantics (SELU -> Linear -> SELU -> Linear, dropout=eval)."""
    h = _selu(state.astype(jnp.float32))
    h = h @ w1.astype(jnp.float32) + b1.reshape(1, -1)
    h = _selu(h)
    h = h @ w2.astype(jnp.float32) + b2.reshape(1, -1)
    return h.astype(state.dtype)


if __name__ == "__main__":
    B, state_dim, vocab_dim = 16, 32, 200   # small, non-128-aligned on purpose

    key = jax.random.PRNGKey(0)
    k_x, k_w1, k_b1, k_w2, k_b2 = jax.random.split(key, 5)

    state = jax.random.normal(k_x, (B, state_dim), dtype=jnp.float32)

    # Deterministic parameter init (PyTorch Linear-style uniform bounds).
    bound1 = 1.0 / (state_dim ** 0.5)
    w1 = jax.random.uniform(k_w1, (state_dim, vocab_dim), jnp.float32, -bound1, bound1)
    b1 = jax.random.uniform(k_b1, (1, vocab_dim), jnp.float32, -bound1, bound1)
    bound2 = 1.0 / (vocab_dim ** 0.5)
    w2 = jax.random.uniform(k_w2, (vocab_dim, vocab_dim), jnp.float32, -bound2, bound2)
    b2 = jax.random.uniform(k_b2, (1, vocab_dim), jnp.float32, -bound2, bound2)

    out = vqa_decoder(state, w1, b1, w2, b2)
    out = jax.block_until_ready(out)
    assert out.shape == (B, vocab_dim)

    # Exact-path check against the bf16-MXU compute path.
    ref_b = reference_bf16(state, w1, b1, w2, b2)
    assert jnp.allclose(out, ref_b, atol=2e-3, rtol=2e-3), "mismatch vs bf16 reference"

    # Sanity check against pure-f32 module semantics (loose tol for bf16 drift).
    ref_f = reference_f32(state, w1, b1, w2, b2)
    assert jnp.allclose(out, ref_f, atol=1e-1, rtol=1e-1), "mismatch vs f32 reference"

    print("KERNEL_OK")
</pallas_src>

<mosaic_0001>
module attributes {stable_mosaic.version = 11 : i64} {
  func.func @_fused_kernel(%arg0: i32, %arg1: i32, %arg2: memref<16x128xf32, #tpu.memory_space<vmem>>, %arg3: memref<128x256xbf16, #tpu.memory_space<vmem>>, %arg4: memref<1x256xf32, #tpu.memory_space<vmem>>, %arg5: memref<256x256xbf16, #tpu.memory_space<vmem>>, %arg6: memref<1x256xf32, #tpu.memory_space<vmem>>, %arg7: memref<16x256xf32, #tpu.memory_space<vmem>>, %arg8: memref<16x256xbf16, #tpu.memory_space<vmem>>) attributes {dimension_semantics = [#tpu.dimension_semantics<parallel>, #tpu.dimension_semantics<arbitrary>], iteration_bounds = array<i64: 1, 1>, scalar_prefetch = 0 : i64, scratch_operands = 1 : i64, tpu.core_type = #tpu.core_type<tc>, window_params = [{transform_indices = @transform_0, window_bounds = array<i64: 16, 128>}, {pipeline_mode = #tpu.pipeline_mode<synchronous>, transform_indices = @transform_1, window_bounds = array<i64: 128, 256>}, {pipeline_mode = #tpu.pipeline_mode<synchronous>, transform_indices = @transform_2, window_bounds = array<i64: 1, 256>}, {transform_indices = @transform_3, window_bounds = array<i64: 256, 256>}, {transform_indices = @transform_4, window_bounds = array<i64: 1, 256>}, {transform_indices = @transform_5, window_bounds = array<i64: 16, 256>}]} {
    %c0_i32 = arith.constant 0 : i32
    %0 = arith.cmpi eq, %arg1, %c0_i32 : i32
    %1 = arith.extui %0 : i1 to i32
    %c0_i32_0 = arith.constant 0 : i32
    %2 = arith.cmpi ne, %1, %c0_i32_0 : i32
    scf.if %2 {
      %c0_8 = arith.constant 0 : index
      %c0_9 = arith.constant 0 : index
      %10 = vector.load %arg2[%c0_8, %c0_9] : memref<16x128xf32, #tpu.memory_space<vmem>>, vector<16x128xf32>
      %cst_10 = arith.constant 0.000000e+00 : f32
      %11 = vector.broadcast %cst_10 : f32 to vector<16x128xf32>
      %12 = arith.cmpf ogt, %10, %11 : vector<16x128xf32>
      %13 = math.exp %10 : vector<16x128xf32>
      %cst_11 = arith.constant 1.000000e+00 : f32
      %14 = vector.broadcast %cst_11 : f32 to vector<16x128xf32>
      %15 = arith.subf %13, %14 : vector<16x128xf32>
      %cst_12 = arith.constant 1.67326319 : f32
      %16 = vector.broadcast %cst_12 : f32 to vector<16x128xf32>
      %17 = arith.mulf %16, %15 : vector<16x128xf32>
      %18 = arith.select %12, %10, %17 : vector<16x128xi1>, vector<16x128xf32>
      %cst_13 = arith.constant 1.05070102 : f32
      %19 = vector.broadcast %cst_13 : f32 to vector<16x128xf32>
      %20 = arith.mulf %19, %18 : vector<16x128xf32>
      %21 = arith.truncf %20 : vector<16x128xf32> to vector<16x128xbf16>
      %c0_i32_14 = arith.constant 0 : i32
      %c256_i32 = arith.constant 256 : i32
      %22 = arith.muli %c0_i32_14, %c256_i32 : i32
      %23 = tpu.assume_multiple %22, 256 : i32
      %c0_15 = arith.constant 0 : index
      %24 = arith.index_cast %23 : i32 to index
      %25 = vector.load %arg3[%c0_15, %24] : memref<128x256xbf16, #tpu.memory_space<vmem>>, vector<128x256xbf16>
      %cst_16 = arith.constant dense<0.000000e+00> : vector<16x256xf32>
      %26 = tpu.matmul %21, %25, %cst_16 {dimension_numbers = #tpu.dot_dimension_numbers<[1], [0], [0], [1], [0, 0, 1, 1], [], []>} : vector<16x128xbf16>, vector<128x256xbf16>, vector<16x256xf32> -> vector<16x256xf32>
      %c0_17 = arith.constant 0 : index
      %27 = arith.index_cast %23 : i32 to index
      %28 = vector.load %arg4[%c0_17, %27] : memref<1x256xf32, #tpu.memory_space<vmem>>, vector<1x256xf32>
      %29 = vector.broadcast %28 : vector<1x256xf32> to vector<16x256xf32>
      %30 = arith.addf %26, %29 : vector<16x256xf32>
      %cst_18 = arith.constant 0.000000e+00 : f32
      %31 = vector.broadcast %cst_18 : f32 to vector<16x256xf32>
      %32 = arith.cmpf ogt, %30, %31 : vector<16x256xf32>
      %33 = math.exp %30 : vector<16x256xf32>
      %cst_19 = arith.constant 1.000000e+00 : f32
      %34 = vector.broadcast %cst_19 : f32 to vector<16x256xf32>
      %35 = arith.subf %33, %34 : vector<16x256xf32>
      %cst_20 = arith.constant 1.67326319 : f32
      %36 = vector.broadcast %cst_20 : f32 to vector<16x256xf32>
      %37 = arith.mulf %36, %35 : vector<16x256xf32>
      %38 = arith.select %32, %30, %37 : vector<16x256xi1>, vector<16x256xf32>
      %cst_21 = arith.constant 1.05070102 : f32
      %39 = vector.broadcast %cst_21 : f32 to vector<16x256xf32>
      %40 = arith.mulf %39, %38 : vector<16x256xf32>
      %41 = arith.truncf %40 : vector<16x256xf32> to vector<16x256xbf16>
      %c0_22 = arith.constant 0 : index
      %42 = arith.index_cast %23 : i32 to index
      %43 = vector.load %arg8[%c0_22, %42] : memref<16x256xbf16, #tpu.memory_space<vmem>>, vector<16x256xbf16>
      tpu.vector_store %arg8[%c0_22, %42], %41 {strides = array<i32>} : memref<16x256xbf16, #tpu.memory_space<vmem>>, vector<16x256xbf16>,
      %c1_i32 = arith.constant 1 : i32
    } else {
    }
    %c0 = arith.constant 0 : index
    %c0_1 = arith.constant 0 : index
    %3 = vector.load %arg8[%c0, %c0_1] : memref<16x256xbf16, #tpu.memory_space<vmem>>, vector<16x256xbf16>
    %c0_2 = arith.constant 0 : index
    %c0_3 = arith.constant 0 : index
    %4 = vector.load %arg5[%c0_2, %c0_3] : memref<256x256xbf16, #tpu.memory_space<vmem>>, vector<256x256xbf16>
    %cst = arith.constant dense<0.000000e+00> : vector<16x256xf32>
    %5 = tpu.matmul %3, %4, %cst {dimension_numbers = #tpu.dot_dimension_numbers<[1], [0], [0], [1], [0, 0, 1, 1], [], []>} : vector<16x256xbf16>, vector<256x256xbf16>, vector<16x256xf32> -> vector<16x256xf32>
    %c0_4 = arith.constant 0 : index
    %c0_5 = arith.constant 0 : index
    %6 = vector.load %arg6[%c0_4, %c0_5] : memref<1x256xf32, #tpu.memory_space<vmem>>, vector<1x256xf32>
    %7 = vector.broadcast %6 : vector<1x256xf32> to vector<16x256xf32>
    %8 = arith.addf %5, %7 : vector<16x256xf32>
    %c0_6 = arith.constant 0 : index
    %c0_7 = arith.constant 0 : index
    %9 = vector.load %arg7[%c0_6, %c0_7] : memref<16x256xf32, #tpu.memory_space<vmem>>, vector<16x256xf32>
    tpu.vector_store %arg7[%c0_6, %c0_7], %8 {strides = array<i32>} : memref<16x256xf32, #tpu.memory_space<vmem>>, vector<16x256xf32>,
    return
  }
  func.func @transform_0(%arg0: i32, %arg1: i32) -> (i32, i32) {
    %c0_i32 = arith.constant 0 : i32
    %c0_i32_0 = arith.constant 0 : i32
    return %arg0, %c0_i32 : i32, i32
  }
  func.func @transform_1(%arg0: i32, %arg1: i32) -> (i32, i32) {
    %c0_i32 = arith.constant 0 : i32
    %c0_i32_0 = arith.constant 0 : i32
    %c0_i32_1 = arith.constant 0 : i32
    return %c0_i32, %c0_i32_0 : i32, i32
  }
  func.func @transform_2(%arg0: i32, %arg1: i32) -> (i32, i32) {
    %c0_i32 = arith.constant 0 : i32
    %c0_i32_0 = arith.constant 0 : i32
    %c0_i32_1 = arith.constant 0 : i32
    return %c0_i32, %c0_i32_0 : i32, i32
  }
  func.func @transform_3(%arg0: i32, %arg1: i32) -> (i32, i32) {
    %c0_i32 = arith.constant 0 : i32
    %c0_i32_0 = arith.constant 0 : i32
    return %c0_i32, %arg1 : i32, i32
  }
  func.func @transform_4(%arg0: i32, %arg1: i32) -> (i32, i32) {
    %c0_i32 = arith.constant 0 : i32
    %c0_i32_0 = arith.constant 0 : i32
    return %c0_i32, %arg1 : i32, i32
  }
  func.func @transform_5(%arg0: i32, %arg1: i32) -> (i32, i32) {
    %c0_i32 = arith.constant 0 : i32
    return %arg0, %arg1 : i32, i32
  }
}

</mosaic_0001>

<llo_original>
// kernel: tpu_custom_call.1
$region0: #{tpu_custom_call.1}
  #allocation0 [shape = 'u32[]', space=smem, size = 0x4, offset = 0x4, fixed_abs, tag = 'smem constant byte address 0x4 - core index']
  #allocation1 [shape = 'u32[144,128]{1,0:T(1,128)}', space=vmem, size = 0x12000, scoped, tag = 'internal scratch']
  #allocation2 [shape = 'bf16[16,256]{1,0:T(8,128)(2,1)}', space=vmem, size = 0x2000, scoped, tag = 'scratch operand']
  %s0 = inlined_call_operand.hbm [shape: f32[16,128], index: 0, kind: input, shape index: {}]
  %s1 = inlined_call_operand.hbm [shape: bf16[128,256], index: 1, kind: input, shape index: {}]
  %s2 = inlined_call_operand.vmem [shape: f32[1,256], index: 2, kind: input, shape index: {}]
  %s3 = inlined_call_operand.hbm [shape: bf16[256,256], index: 3, kind: input, shape index: {}]
  %s4 = inlined_call_operand.vmem [shape: f32[1,256], index: 4, kind: input, shape index: {}]
  %s5 = inlined_call_operand.hbm [shape: f32[16,256], index: 5, kind: output, shape index: {}]
  %s6 = sld [smem:[#allocation0]]
  $region46: #{tpu_custom_call.1} parent=0
    _
  %s8 = ssub.s32 1, %s6
  %s9 = scalar_select 0, %s8, %s6
  $region1: #{tpu_custom_call.1} parent=0
    #allocation3 [shape = 'u8[8192]{0}', space=vmem, size = 0x2000, scoped, tag = 'input window, operand 0, single buffered']
    #allocation4 [shape = 's32[1]{0}', space=sflag, size = 0x4, scoped, tag = 'scoped memory for tpu_custom_call.1']
    #allocation5 [shape = 's32[1]{0}', space=sflag, size = 0x4, scoped, tag = 'scoped memory for tpu_custom_call.1']
    #allocation6 [shape = 'u8[65536]{0}', space=vmem, size = 0x10000, scoped, tag = 'input window, operand 1, single buffered']
    #allocation7 [shape = 's32[1]{0}', space=sflag, size = 0x4, scoped, tag = 'scoped memory for tpu_custom_call.1']
    #allocation8 [shape = 'u8[131072]{0}', space=vmem, size = 0x20000, scoped, tag = 'input window, operand 3, single buffered']
    #allocation9 [shape = 'u8[16384]{0}', space=vmem, size = 0x4000, scoped, tag = 'output window, operand 0, single buffered']
    %10 = vsyncpa [#allocation4], 0
    %11 = vsyncpa [#allocation7], 0
    %12 = vsyncpa [#allocation5], 0
    // Predicated region
    $region2: #{tpu_custom_call.1} parent=1 // pred_check
      _
    $region3: #{tpu_custom_call.1} parent=1 // pred_check_branch
      %14 = sbr.rel (0) target = $region5
    $region4: #{tpu_custom_call.1} parent=1 // pred_region
      %s16 = ssub.s32 256, 256
      %17 = vsyncadd [#allocation4], %s16
      %s18 = sshll.u32 [#allocation3], 4
      %s19 = int_to_ptr.vmem [resolvable:$true] %s18
      %24 = dma.hbm_to_vmem [thread:$0]  %s0, 256, %s19, [#allocation4], 128, 128, 8
    $region5: #{tpu_custom_call.1} parent=1 // pred_fallthru
      _
    // Predicated region
    $region6: #{tpu_custom_call.1} parent=1 // pred_check
      _
    $region7: #{tpu_custom_call.1} parent=1 // pred_check_branch
      %26 = sbr.rel (0) target = $region9
    $region8: #{tpu_custom_call.1} parent=1 // pred_region
      %s28 = ssub.s32 2048, 2048
      %29 = vsyncadd [#allocation7], %s28
      %s30 = sshll.u32 [#allocation6], 4
      %s31 = int_to_ptr.vmem [resolvable:$true] %s30
      %36 = dma.hbm_to_vmem [thread:$0]  %s1, 2048, %s31, [#allocation7], 128, 128, 8
    $region9: #{tpu_custom_call.1} parent=1 // pred_fallthru
      _
    // Predicated region
    $region10: #{tpu_custom_call.1} parent=1 // pred_check
      _
    $region11: #{tpu_custom_call.1} parent=1 // pred_check_branch
      %38 = sbr.rel (0) target = $region13
    $region12: #{tpu_custom_call.1} parent=1 // pred_region
      _
    $region13: #{tpu_custom_call.1} parent=1 // pred_fallthru
      _
    // Predicated region
    $region14: #{tpu_custom_call.1} parent=1 // pred_check
      _
    $region15: #{tpu_custom_call.1} parent=1 // pred_check_branch
      %40 = sbr.rel (0) target = $region17
    $region16: #{tpu_custom_call.1} parent=1 // pred_region
      %s42 = ssub.s32 4096, 4096
      %43 = vsyncadd [#allocation7], %s42
      %s44 = sshll.u32 [#allocation8], 4
      %s45 = int_to_ptr.vmem [resolvable:$true] %s44
      %50 = dma.hbm_to_vmem [thread:$0]  %s3, 4096, %s45, [#allocation7], 128, 128, 8
    $region17: #{tpu_custom_call.1} parent=1 // pred_fallthru
      _
    // Predicated region
    $region18: #{tpu_custom_call.1} parent=1 // pred_check
      _
    $region19: #{tpu_custom_call.1} parent=1 // pred_check_branch
      %52 = sbr.rel (0) target = $region21
    $region20: #{tpu_custom_call.1} parent=1 // pred_region
      _
    $region21: #{tpu_custom_call.1} parent=1 // pred_fallthru
      _
    // Predicated region
    $region22: #{tpu_custom_call.1} parent=1 // pred_check
      _
    $region23: #{tpu_custom_call.1} parent=1 // pred_check_branch
      %54 = sbr.rel (0) target = $region25
    $region24: #{tpu_custom_call.1} parent=1 // pred_region
      %55 = dma.done [#allocation4], 256
    $region25: #{tpu_custom_call.1} parent=1 // pred_fallthru
      _
    // Predicated region
    $region26: #{tpu_custom_call.1} parent=1 // pred_check
      _
    $region27: #{tpu_custom_call.1} parent=1 // pred_check_branch
      %57 = sbr.rel (0) target = $region29
    $region28: #{tpu_custom_call.1} parent=1 // pred_region
      %58 = dma.done [#allocation7], 2048
    $region29: #{tpu_custom_call.1} parent=1 // pred_fallthru
      _
    // Predicated region
    $region30: #{tpu_custom_call.1} parent=1 // pred_check
      _
    $region31: #{tpu_custom_call.1} parent=1 // pred_check_branch
      %60 = sbr.rel (0) target = $region33
    $region32: #{tpu_custom_call.1} parent=1 // pred_region
      %61 = dma.done [#allocation7], 4096
    $region33: #{tpu_custom_call.1} parent=1 // pred_fallthru
      _
    %p63 = scmp.eq.s32.totalorder 0, 0
    // Predicated region
    $region34: #{tpu_custom_call.1} parent=1 // pred_check
      %p64 = pneg %p63
    $region35: #{tpu_custom_call.1} parent=1 // pred_check_branch
      %66 = sbr.rel (%p64) target = $region37
    $region36: #{tpu_custom_call.1} parent=1 // pred_region
      %v67 = vld [vmem:[#allocation3] sm:$0xff]
      %v68 = vld [vmem:[#allocation3 + $0x8] sm:$0xff]
      %vm69 = vcmp.gt.f32.partialorder %v67, 0.0
      %vm70 = vcmp.gt.f32.partialorder %v68, 0.0
      %v71 = vmul.f32 %v67, 1.442695
      %v72 = vpow.pop %v71
      %v73 = vmul.f32 %v68, 1.442695
      %v74 = vpow.pop %v73
      %v75 = vsub.f32 %v72, 1.0
      %v76 = vsub.f32 %v74, 1.0
      %v77 = vmul.f32 %v75, 1.6732632
      %v78 = vmul.f32 %v76, 1.6732632
      %v79 = vsel %vm69, %v67, %v77
      %v80 = vsel %vm70, %v68, %v78
      %v81 = vmul.f32 %v79, 1.050701
      %v82 = vmul.f32 %v80, 1.050701
      %v83 = vpack.c.bf16 %v82, %v81
      %v84 = vld [vmem:[#allocation6] sm:$0xff]
      %v85 = vld [vmem:[#allocation6 + $0x8] sm:$0xff]
      %v86 = vld [vmem:[#allocation6 + $0x10] sm:$0xff]
      %v87 = vld [vmem:[#allocation6 + $0x18] sm:$0xff]
      %v88 = vld [vmem:[#allocation6 + $0x20] sm:$0xff]
      %v89 = vld [vmem:[#allocation6 + $0x28] sm:$0xff]
      %v90 = vld [vmem:[#allocation6 + $0x30] sm:$0xff]
      %v91 = vld [vmem:[#allocation6 + $0x38] sm:$0xff]
      %v92 = vld [vmem:[#allocation6 + $0x40] sm:$0xff]
      %v93 = vld [vmem:[#allocation6 + $0x48] sm:$0xff]
      %v94 = vld [vmem:[#allocation6 + $0x50] sm:$0xff]
      %v95 = vld [vmem:[#allocation6 + $0x58] sm:$0xff]
      %v96 = vld [vmem:[#allocation6 + $0x60] sm:$0xff]
      %v97 = vld [vmem:[#allocation6 + $0x68] sm:$0xff]
      %v98 = vld [vmem:[#allocation6 + $0x70] sm:$0xff]
      %v99 = vld [vmem:[#allocation6 + $0x78] sm:$0xff]
      %v100 = vld [vmem:[%s2] sm:$0x3]
      %v102 = vlaneseq
      %v103 = vshrl.u32 %v102, 7
      %v104 = vsub.s32 0, %v103
      %v105 = vrot.slane %v100, %v104
      %v106 = vlaneseq
      %v107 = vshrl.u32 %v106, 7
      %v108 = vsub.s32 1, %v107
      %v109 = vrot.slane %v100, %v108
      %v128 = vunpack.c.l.b16 %v84
      %v129 = vunpack.c.h.b16 %v84
      %v130 = vunpack.c.l.b16 %v85
      %v131 = vunpack.c.h.b16 %v85
      %v132 = vunpack.c.l.b16 %v86
      %v133 = vunpack.c.h.b16 %v86
      %v134 = vunpack.c.l.b16 %v87
      %v135 = vunpack.c.h.b16 %v87
      %v136 = vunpack.c.l.b16 %v88
      %v137 = vunpack.c.h.b16 %v88
      %v138 = vunpack.c.l.b16 %v89
      %v139 = vunpack.c.h.b16 %v89
      %v140 = vunpack.c.l.b16 %v90
      %v141 = vunpack.c.h.b16 %v90
      %v142 = vunpack.c.l.b16 %v91
      %v143 = vunpack.c.h.b16 %v91
      %v144 = vunpack.c.l.b16 %v92
      %v145 = vunpack.c.h.b16 %v92
      %v146 = vunpack.c.l.b16 %v93
      %v147 = vunpack.c.h.b16 %v93
      %v148 = vunpack.c.l.b16 %v94
      %v149 = vunpack.c.h.b16 %v94
      %v150 = vunpack.c.l.b16 %v95
      %v151 = vunpack.c.h.b16 %v95
      %v152 = vunpack.c.l.b16 %v96
      %v153 = vunpack.c.h.b16 %v96
      %v154 = vunpack.c.l.b16 %v97
      %v155 = vunpack.c.h.b16 %v97
      %v156 = vunpack.c.l.b16 %v98
      %v157 = vunpack.c.h.b16 %v98
      %v158 = vunpack.c.l.b16 %v99
      %v159 = vunpack.c.h.b16 %v99
      %v160 = vpack.c.b16 %v130, %v128
      %v161 = vpack.c.b16 %v131, %v129
      %v162 = vpack.c.b16 %v134, %v132
      %v163 = vpack.c.b16 %v135, %v133
      %v164 = vpack.c.b16 %v138, %v136
      %v165 = vpack.c.b16 %v139, %v137
      %v166 = vpack.c.b16 %v142, %v140
      %v167 = vpack.c.b16 %v143, %v141
      %v168 = vpack.c.b16 %v146, %v144
      %v169 = vpack.c.b16 %v147, %v145
      %v170 = vpack.c.b16 %v150, %v148
      %v171 = vpack.c.b16 %v151, %v149
      %v172 = vpack.c.b16 %v154, %v152
      %v173 = vpack.c.b16 %v155, %v153
      %v174 = vpack.c.b16 %v158, %v156
      %v175 = vpack.c.b16 %v159, %v157
      %192 = vmatprep.subr.bf16.mxu0 %v175
      %193 = vmatpush1.bf16.msra.mxu0 %v174
      %194 = vmatprep.subr.bf16.mxu0 %v173
      %195 = vmatpush1.bf16.msra.mxu0 %v172
      %196 = vmatprep.subr.bf16.mxu0 %v171
      %197 = vmatpush1.bf16.msra.mxu0 %v170
      %198 = vmatprep.subr.bf16.mxu0 %v169
      %199 = vmatpush1.bf16.msra.mxu0 %v168
      %200 = vmatprep.subr.bf16.mxu0 %v167
      %201 = vmatpush1.bf16.msra.mxu0 %v166
      %202 = vmatprep.subr.bf16.mxu0 %v165
      %203 = vmatpush1.bf16.msra.mxu0 %v164
      %204 = vmatprep.subr.bf16.mxu0 %v163
      %205 = vmatpush1.bf16.msra.mxu0 %v162
      %206 = vmatprep.subr.bf16.mxu0 %v161
      %207 = vmatpush1.bf16.msra.mxu0 %v160
      %208 = vmatprep.subr.bf16.mxu0 0
      %209 = vmatpush2.bf16.msra.mxu0 0
      %210 = vmatprep.subr.bf16.mxu0 0
      %211 = vmatpush2.bf16.msra.mxu0 0
      %212 = vmatprep.subr.bf16.mxu0 0
      %213 = vmatpush2.bf16.msra.mxu0 0
      %214 = vmatprep.subr.bf16.mxu0 0
      %215 = vmatpush2.bf16.msra.mxu0 0
      %216 = vmatprep.subr.bf16.mxu0 0
      %217 = vmatpush2.bf16.msra.mxu0 0
      %218 = vmatprep.subr.bf16.mxu0 0
      %219 = vmatpush2.bf16.msra.mxu0 0
      %220 = vmatprep.subr.bf16.mxu0 0
      %221 = vmatpush2.bf16.msra.mxu0 0
      %222 = vmatprep.subr.bf16.mxu0 0
      %223 = vmatpush2.bf16.msra.mxu0 0
      %224 = vmatprep.mubr.bf16.mxu0 0
      %225 = vmatmul.mubr.bf16.gmra.mxu0 %v83
      %v226 = vpop.f32.mrf.mxu0
      %v227 = vadd.f32 %v105, %v226
      %v228 = vpop.f32.mrf.mxu0
      %v229 = vadd.f32 %v109, %v228
      %v230 = vpop.f32.mrf.mxu0
      %v231 = vadd.f32 %v105, %v230
      %v232 = vpop.f32.mrf.mxu0
      %v233 = vadd.f32 %v109, %v232
      %234 = vdwg.mxu0
      %vm235 = vcmp.gt.f32.partialorder %v227, 0.0
      %vm236 = vcmp.gt.f32.partialorder %v229, 0.0
      %vm237 = vcmp.gt.f32.partialorder %v231, 0.0
      %vm238 = vcmp.gt.f32.partialorder %v233, 0.0
      %v239 = vmul.f32 %v227, 1.442695
      %v240 = vpow.pop %v239
      %v241 = vmul.f32 %v229, 1.442695
      %v242 = vpow.pop %v241
      %v243 = vmul.f32 %v231, 1.442695
      %v244 = vpow.pop %v243
      %v245 = vmul.f32 %v233, 1.442695
      %v246 = vpow.pop %v245
      %v247 = vsub.f32 %v240, 1.0
      %v248 = vsub.f32 %v242, 1.0
      %v249 = vsub.f32 %v244, 1.0
      %v250 = vsub.f32 %v246, 1.0
      %v251 = vmul.f32 %v247, 1.6732632
      %v252 = vmul.f32 %v248, 1.6732632
      %v253 = vmul.f32 %v249, 1.6732632
      %v254 = vmul.f32 %v250, 1.6732632
      %v255 = vsel %vm235, %v227, %v251
      %v256 = vsel %vm236, %v229, %v252
      %v257 = vsel %vm237, %v231, %v253
      %v258 = vsel %vm238, %v233, %v254
      %v259 = vmul.f32 %v255, 1.050701
      %v260 = vmul.f32 %v256, 1.050701
      %v261 = vmul.f32 %v257, 1.050701
      %v262 = vmul.f32 %v258, 1.050701
      %v263 = vpack.c.bf16 %v261, %v259
      %v264 = vpack.c.bf16 %v262, %v260
      %v267 = vunpack.c.l.b16 %v263
      %v268 = vunpack.c.l.b16 %v264
      %v269 = vunpack.c.h.b16 %v263
      %v270 = vunpack.c.h.b16 %v264
      %v271 = vpack.c.b16 %v268, %v267
      %v272 = vpack.c.b16 %v270, %v269
      %275 = vst [vmem:[#allocation2] sm:$0xff] %v271
      %276 = vst [vmem:[#allocation2 + $0x8] sm:$0xff] %v272
    $region37: #{tpu_custom_call.1} parent=1 // pred_fallthru
      _
    %v277 = vld [vmem:[#allocation2] sm:$0xff]
    %v278 = vld [vmem:[#allocation2 + $0x8] sm:$0xff]
    %v279 = vld [vmem:[#allocation8] sm:$0xff]
    %v280 = vld [vmem:[#allocation8 + $0x8] sm:$0xff]
    %v281 = vld [vmem:[#allocation8 + $0x10] sm:$0xff]
    %v282 = vld [vmem:[#allocation8 + $0x18] sm:$0xff]
    %v283 = vld [vmem:[#allocation8 + $0x20] sm:$0xff]
    %v284 = vld [vmem:[#allocation8 + $0x28] sm:$0xff]
    %v285 = vld [vmem:[#allocation8 + $0x30] sm:$0xff]
    %v286 = vld [vmem:[#allocation8 + $0x38] sm:$0xff]
    %v287 = vld [vmem:[#allocation8 + $0x40] sm:$0xff]
    %v288 = vld [vmem:[#allocation8 + $0x48] sm:$0xff]
    %v289 = vld [vmem:[#allocation8 + $0x50] sm:$0xff]
    %v290 = vld [vmem:[#allocation8 + $0x58] sm:$0xff]
    %v291 = vld [vmem:[#allocation8 + $0x60] sm:$0xff]
    %v292 = vld [vmem:[#allocation8 + $0x68] sm:$0xff]
    %v293 = vld [vmem:[#allocation8 + $0x70] sm:$0xff]
    %v294 = vld [vmem:[#allocation8 + $0x78] sm:$0xff]
    %v295 = vld [vmem:[#allocation8 + $0x80] sm:$0xff]
    %v296 = vld [vmem:[#allocation8 + $0x88] sm:$0xff]
    %v297 = vld [vmem:[#allocation8 + $0x90] sm:$0xff]
    %v298 = vld [vmem:[#allocation8 + $0x98] sm:$0xff]
    %v299 = vld [vmem:[#allocation8 + $0xa0] sm:$0xff]
    %v300 = vld [vmem:[#allocation8 + $0xa8] sm:$0xff]
    %v301 = vld [vmem:[#allocation8 + $0xb0] sm:$0xff]
    %v302 = vld [vmem:[#allocation8 + $0xb8] sm:$0xff]
    %v303 = vld [vmem:[#allocation8 + $0xc0] sm:$0xff]
    %v304 = vld [vmem:[#allocation8 + $0xc8] sm:$0xff]
    %v305 = vld [vmem:[#allocation8 + $0xd0] sm:$0xff]
    %v306 = vld [vmem:[#allocation8 + $0xd8] sm:$0xff]
    %v307 = vld [vmem:[#allocation8 + $0xe0] sm:$0xff]
    %v308 = vld [vmem:[#allocation8 + $0xe8] sm:$0xff]
    %v309 = vld [vmem:[#allocation8 + $0xf0] sm:$0xff]
    %v310 = vld [vmem:[#allocation8 + $0xf8] sm:$0xff]
    %v311 = vld [vmem:[%s4] sm:$0x3]
    %v313 = vlaneseq
    %v314 = vshrl.u32 %v313, 7
    %v315 = vsub.s32 0, %v314
    %v316 = vrot.slane %v311, %v315
    %v317 = vlaneseq
    %v318 = vshrl.u32 %v317, 7
    %v319 = vsub.s32 1, %v318
    %v320 = vrot.slane %v311, %v319
    %v325 = vunpack.c.l.b16 %v277
    %v326 = vunpack.c.h.b16 %v277
    %v327 = vunpack.c.l.b16 %v278
    %v328 = vunpack.c.h.b16 %v278
    %v329 = vpack.c.b16 %v327, %v325
    %v330 = vpack.c.b16 %v328, %v326
    %v365 = vunpack.c.l.b16 %v279
    %v366 = vunpack.c.h.b16 %v279
    %v367 = vunpack.c.l.b16 %v280
    %v368 = vunpack.c.h.b16 %v280
    %v369 = vunpack.c.l.b16 %v281
    %v370 = vunpack.c.h.b16 %v281
    %v371 = vunpack.c.l.b16 %v282
    %v372 = vunpack.c.h.b16 %v282
    %v373 = vunpack.c.l.b16 %v283
    %v374 = vunpack.c.h.b16 %v283
    %v375 = vunpack.c.l.b16 %v284
    %v376 = vunpack.c.h.b16 %v284
    %v377 = vunpack.c.l.b16 %v285
    %v378 = vunpack.c.h.b16 %v285
    %v379 = vunpack.c.l.b16 %v286
    %v380 = vunpack.c.h.b16 %v286
    %v381 = vunpack.c.l.b16 %v287
    %v382 = vunpack.c.h.b16 %v287
    %v383 = vunpack.c.l.b16 %v288
    %v384 = vunpack.c.h.b16 %v288
    %v385 = vunpack.c.l.b16 %v289
    %v386 = vunpack.c.h.b16 %v289
    %v387 = vunpack.c.l.b16 %v290
    %v388 = vunpack.c.h.b16 %v290
    %v389 = vunpack.c.l.b16 %v291
    %v390 = vunpack.c.h.b16 %v291
    %v391 = vunpack.c.l.b16 %v292
    %v392 = vunpack.c.h.b16 %v292
    %v393 = vunpack.c.l.b16 %v293
    %v394 = vunpack.c.h.b16 %v293
    %v395 = vunpack.c.l.b16 %v294
    %v396 = vunpack.c.h.b16 %v294
    %v397 = vunpack.c.l.b16 %v295
    %v398 = vunpack.c.h.b16 %v295
    %v399 = vunpack.c.l.b16 %v296
    %v400 = vunpack.c.h.b16 %v296
    %v401 = vunpack.c.l.b16 %v297
    %v402 = vunpack.c.h.b16 %v297
    %v403 = vunpack.c.l.b16 %v298
    %v404 = vunpack.c.h.b16 %v298
    %v405 = vunpack.c.l.b16 %v299
    %v406 = vunpack.c.h.b16 %v299
    %v407 = vunpack.c.l.b16 %v300
    %v408 = vunpack.c.h.b16 %v300
    %v409 = vunpack.c.l.b16 %v301
    %v410 = vunpack.c.h.b16 %v301
    %v411 = vunpack.c.l.b16 %v302
    %v412 = vunpack.c.h.b16 %v302
    %v413 = vunpack.c.l.b16 %v303
    %v414 = vunpack.c.h.b16 %v303
    %v415 = vunpack.c.l.b16 %v304
    %v416 = vunpack.c.h.b16 %v304
    %v417 = vunpack.c.l.b16 %v305
    %v418 = vunpack.c.h.b16 %v305
    %v419 = vunpack.c.l.b16 %v306
    %v420 = vunpack.c.h.b16 %v306
    %v421 = vunpack.c.l.b16 %v307
    %v422 = vunpack.c.h.b16 %v307
    %v423 = vunpack.c.l.b16 %v308
    %v424 = vunpack.c.h.b16 %v308
    %v425 = vunpack.c.l.b16 %v309
    %v426 = vunpack.c.h.b16 %v309
    %v427 = vunpack.c.l.b16 %v310
    %v428 = vunpack.c.h.b16 %v310
    %v429 = vpack.c.b16 %v367, %v365
    %v430 = vpack.c.b16 %v368, %v366
    %v431 = vpack.c.b16 %v371, %v369
    %v432 = vpack.c.b16 %v372, %v370
    %v433 = vpack.c.b16 %v375, %v373
    %v434 = vpack.c.b16 %v376, %v374
    %v435 = vpack.c.b16 %v379, %v377
    %v436 = vpack.c.b16 %v380, %v378
    %v437 = vpack.c.b16 %v383, %v381
    %v438 = vpack.c.b16 %v384, %v382
    %v439 = vpack.c.b16 %v387, %v385
    %v440 = vpack.c.b16 %v388, %v386
    %v441 = vpack.c.b16 %v391, %v389
    %v442 = vpack.c.b16 %v392, %v390
    %v443 = vpack.c.b16 %v395, %v393
    %v444 = vpack.c.b16 %v396, %v394
    %v445 = vpack.c.b16 %v399, %v397
    %v446 = vpack.c.b16 %v400, %v398
    %v447 = vpack.c.b16 %v403, %v401
    %v448 = vpack.c.b16 %v404, %v402
    %v449 = vpack.c.b16 %v407, %v405
    %v450 = vpack.c.b16 %v408, %v406
    %v451 = vpack.c.b16 %v411, %v409
    %v452 = vpack.c.b16 %v412, %v410
    %v453 = vpack.c.b16 %v415, %v413
    %v454 = vpack.c.b16 %v416, %v414
    %v455 = vpack.c.b16 %v419, %v417
    %v456 = vpack.c.b16 %v420, %v418
    %v457 = vpack.c.b16 %v423, %v421
    %v458 = vpack.c.b16 %v424, %v422
    %v459 = vpack.c.b16 %v427, %v425
    %v460 = vpack.c.b16 %v428, %v426
    %493 = vmatprep.subr.bf16.mxu0 %v444
    %494 = vmatpush1.bf16.msra.mxu0 %v443
    %495 = vmatprep.subr.bf16.mxu0 %v442
    %496 = vmatpush1.bf16.msra.mxu0 %v441
    %497 = vmatprep.subr.bf16.mxu0 %v440
    %498 = vmatpush1.bf16.msra.mxu0 %v439
    %499 = vmatprep.subr.bf16.mxu0 %v438
    %500 = vmatpush1.bf16.msra.mxu0 %v437
    %501 = vmatprep.subr.bf16.mxu0 %v436
    %502 = vmatpush1.bf16.msra.mxu0 %v435
    %503 = vmatprep.subr.bf16.mxu0 %v434
    %504 = vmatpush1.bf16.msra.mxu0 %v433
    %505 = vmatprep.subr.bf16.mxu0 %v432
    %506 = vmatpush1.bf16.msra.mxu0 %v431
    %507 = vmatprep.subr.bf16.mxu0 %v430
    %508 = vmatpush1.bf16.msra.mxu0 %v429
    %509 = vmatprep.subr.bf16.mxu0 %v460
    %510 = vmatpush2.bf16.msra.mxu0 %v459
    %511 = vmatprep.subr.bf16.mxu0 %v458
    %512 = vmatpush2.bf16.msra.mxu0 %v457
    %513 = vmatprep.subr.bf16.mxu0 %v456
    %514 = vmatpush2.bf16.msra.mxu0 %v455
    %515 = vmatprep.subr.bf16.mxu0 %v454
    %516 = vmatpush2.bf16.msra.mxu0 %v453
    %517 = vmatprep.subr.bf16.mxu0 %v452
    %518 = vmatpush2.bf16.msra.mxu0 %v451
    %519 = vmatprep.subr.bf16.mxu0 %v450
    %520 = vmatpush2.bf16.msra.mxu0 %v449
    %521 = vmatprep.subr.bf16.mxu0 %v448
    %522 = vmatpush2.bf16.msra.mxu0 %v447
    %523 = vmatprep.subr.bf16.mxu0 %v446
    %524 = vmatpush2.bf16.msra.mxu0 %v445
    %525 = vmatprep.mubr.bf16.mxu0 %v330
    %526 = vmatmul.mubr.bf16.gmra.mxu0 %v329
    %v527 = vpop.f32.mrf.mxu0
    %v528 = vadd.f32 %v316, %v527
    %v529 = vpop.f32.mrf.mxu0
    %v530 = vadd.f32 %v320, %v529
    %v531 = vpop.f32.mrf.mxu0
    %v532 = vadd.f32 %v316, %v531
    %v533 = vpop.f32.mrf.mxu0
    %v534 = vadd.f32 %v320, %v533
    %535 = vdwg.mxu0
    %536 = vst [vmem:[#allocation9] sm:$0xff] %v528
    %537 = vst [vmem:[#allocation9 + $0x8] sm:$0xff] %v530
    %538 = vst [vmem:[#allocation9 + $0x10] sm:$0xff] %v532
    %539 = vst [vmem:[#allocation9 + $0x18] sm:$0xff] %v534
    // Predicated region
    $region38: #{tpu_custom_call.1} parent=1 // pred_check
      _
    $region39: #{tpu_custom_call.1} parent=1 // pred_check_branch
      %541 = sbr.rel (0) target = $region41
    $region40: #{tpu_custom_call.1} parent=1 // pred_region
      %s543 = ssub.s32 512, 512
      %544 = vsyncadd [#allocation5], %s543
      %s545 = sshll.u32 [#allocation9], 4
      %s546 = int_to_ptr.vmem [resolvable:$true] %s545
      %551 = dma.vmem_to_hbm [thread:$0]  %s546, 512, %s5, [#allocation5], 256, 256, 16
    $region41: #{tpu_custom_call.1} parent=1 // pred_fallthru
      _
    // Predicated region
    $region42: #{tpu_custom_call.1} parent=1 // pred_check
      _
    $region43: #{tpu_custom_call.1} parent=1 // pred_check_branch
      %553 = sbr.rel (0) target = $region45
    $region44: #{tpu_custom_call.1} parent=1 // pred_region
      %554 = dma.done [#allocation5], 512
    $region45: #{tpu_custom_call.1} parent=1 // pred_fallthru
      _
    %555 = vsyncpa [#allocation4], 1
    %556 = vsyncpa [#allocation7], 1
    %557 = vsyncpa [#allocation5], 1

</llo_original>
